<compile_context>
chip_gen: v5e
topology: v5e:2x2
jax: 0.10.0
libtpu: 0.0.40
codegen_flags: <defaults>
</compile_context>

<pallas_src>
import functools

import jax
import jax.numpy as jnp
from jax.experimental import pallas as pl
from jax.experimental.pallas import tpu as pltpu

LANES = 128
SUBLANES = 8

_PROJ_MAX_ROWS = 512              # (512, 128) pixels per grid step in channel proj
SCALING_FACTOR = 0.18215          # SD-VAE scaling factor (sv3d.vae.config)


def _round_up(x, m):
    return ((x + m - 1) // m) * m


def _tpu_config():
    """Generation-aware tuning knobs (safe fallbacks if the query fails)."""
    vmem_cap = None
    cores = None
    try:
        info = pltpu.get_tpu_info()
        v = getattr(info, "vmem_capacity_bytes", None)
        if isinstance(v, int) and v > 0:
            vmem_cap = v
        for attr in ("num_cores", "core_count", "num_tensorcores", "tensorcore_count"):
            c = getattr(info, attr, None)
            if isinstance(c, int) and 0 < c <= 8:
                cores = c
                break
    except Exception:
        pass
    if vmem_cap is None:
        vmem_cap = 64 * 1024 * 1024          # conservative: assume v7x-sized VMEM
    big_vmem = vmem_cap >= 100 * 1024 * 1024  # v5e / v6e (128 MiB physical)
    if cores is None:
        cores = 1 if big_vmem else 2          # heuristic: v7x = 2 TCs, v5e/v6e = 1
    mse_rows = 2048 if big_vmem else 1024     # (rows, 128) f32/bf16 per grid step
    vmem_limit = (64 if big_vmem else 32) * 1024 * 1024
    return cores, mse_rows, vmem_limit


_NUM_TC, _MSE_BLOCK_ROWS, _VMEM_LIMIT = _tpu_config()


# --------------------------------------------------------------------------
# Pallas kernels
# --------------------------------------------------------------------------
def _mse_partial_kernel(a_ref, b_ref, out_ref, *, nb, tail_valid):
    """Accumulate sum((a-b)^2) into a per-slice (1, 8, 128) f32 vector.

    nb         : number of *real* logical blocks (static).
    tail_valid : valid element count inside the final logical block (static).

    The cross-lane/sublane reduction is deferred to a tiny jnp.sum of the
    partials in the wrapper, so the hot loop is pure loads + VPU FMAs
    (HBM-bound).  Tail masking only runs on the final logical block; clamped
    (revisited) grid steps skip accumulation entirely.
    """
    i = pl.program_id(1)
    blk = pl.program_id(0) * pl.num_programs(1) + i

    @pl.when(i == 0)
    def _():
        out_ref[...] = jnp.zeros_like(out_ref)

    br, lanes = a_ref.shape
    blk_elems = br * lanes

    def _sq():
        d = a_ref[...].astype(jnp.float32) - b_ref[...].astype(jnp.float32)
        return d * d

    def _acc(sq):
        out_ref[...] += sq.reshape(1, br // SUBLANES, SUBLANES, lanes).sum(axis=1)

    if tail_valid == blk_elems:
        # No ragged tail: every real block is full; just skip revisited blocks.
        @pl.when(blk < nb)
        def _():
            _acc(_sq())
    else:
        # Fast path for all full blocks — no per-element mask arithmetic.
        @pl.when(blk < nb - 1)
        def _():
            _acc(_sq())

        # Masked path only on the single final logical block.  tail_valid is a
        # compile-time constant, so this is one iota/compare/select in-block.
        @pl.when(blk == nb - 1)
        def _():
            sq = _sq()
            row = jax.lax.broadcasted_iota(jnp.int32, (br, lanes), 0)
            lane = jax.lax.broadcasted_iota(jnp.int32, (br, lanes), 1)
            sq = jnp.where(row * lanes + lane < tail_valid, sq, 0.0)
            _acc(sq)


def _channel_proj_kernel(w_ref, x_ref, o_ref, *, c_in, c_out, scale, shift, lo, hi):
    """Per-pixel 1x1 channel projection on the VPU with a fused affine+clamp
    epilogue, on vreg-dense (rows, 128) pixel slabs.

    x_ref : (c_in, TR, L)   pixels lane-dense (L = 128, or full P fallback)
    w_ref : (c_in, c_out)   f32 in SMEM (scalar reads, broadcast FMAs)
    o_ref : (c_out, TR, L)

    out[n] = clip((sum_k w[k, n] * x[k]) * scale + shift, lo, hi)
    """
    # Hoist per-channel loads and dtype casts out of the c_out loop.
    xs = [x_ref[k].astype(jnp.float32) for k in range(c_in)]
    for n in range(c_out):
        acc = xs[0] * w_ref[0, n]
        for k in range(1, c_in):
            acc = acc + xs[k] * w_ref[k, n]
        y = acc * scale + shift
        if lo is not None:
            y = jnp.clip(y, lo, hi)
        o_ref[n] = y.astype(o_ref.dtype)


# --------------------------------------------------------------------------
# Wrappers
# --------------------------------------------------------------------------
def pallas_mse(a, b):
    """mean((a - b)^2) as an f32 scalar; reduction done in-kernel.

    Computed in f32 even if `a` is bf16 and `b` is f32 — matches the reference
    where the bf16 prediction is compared against the f32 target.  (Feeding a
    bf16 copy of the target would cut HBM traffic ~1.5x but change numerics.)
    """
    af = a.reshape(-1)
    bf = b.reshape(-1)
    n = af.shape[0]
    if n % LANES:
        # TODO(synk): rare fallback — pads the flat view to a lane multiple
        # (one extra copy); image tensors here are always 128-divisible.
        pad = LANES - n % LANES
        af = jnp.pad(af, (0, pad))
        bf = jnp.pad(bf, (0, pad))
    rows = af.shape[0] // LANES
    a2 = af.reshape(rows, LANES)
    b2 = bf.reshape(rows, LANES)

    # Big blocks (multiple of 16 sublanes for bf16 inputs) amortize per-step
    # overhead; cdiv grid + final-block mask handles the ragged tail.
    br = min(_MSE_BLOCK_ROWS, _round_up(rows, 2 * SUBLANES))
    nb = pl.cdiv(rows, br)
    outer = _NUM_TC if nb >= _NUM_TC else 1   # multi-TC split only when useful
    inner = pl.cdiv(nb, outer)
    tail_valid = n - (nb - 1) * br * LANES    # static valid count in last block

    partials = pl.pallas_call(
        functools.partial(_mse_partial_kernel, nb=nb, tail_valid=tail_valid),
        out_shape=jax.ShapeDtypeStruct((outer, SUBLANES, LANES), jnp.float32),
        grid=(outer, inner),
        in_specs=[
            pl.BlockSpec((br, LANES), lambda p, i, inner=inner: (p * inner + i, 0)),
            pl.BlockSpec((br, LANES), lambda p, i, inner=inner: (p * inner + i, 0)),
        ],
        out_specs=pl.BlockSpec((1, SUBLANES, LANES), lambda p, i: (p, 0, 0)),
        compiler_params=pltpu.CompilerParams(
            dimension_semantics=("parallel", "arbitrary"),
            vmem_limit_bytes=_VMEM_LIMIT,
        ),
    )(a2, b2)
    return jnp.sum(partials) / jnp.float32(n)


def pallas_channel_proj(x, w_kn, *, scale=1.0, shift=0.0, lo=None, hi=None,
                        out_dtype=jnp.bfloat16):
    """out[s, n, p] = clip((sum_k w[k, n] * x[s, k, p]) * scale + shift, lo, hi).

    x: (N, c_in, P) — the natural per-sample channel layout (pure reshape of
    [.., C, h, w], no transpose).  Pixels are viewed as (P//128, 128) so loads
    and stores are full dense vregs; gridded over (sample, pixel-row tiles) so
    the VMEM footprint is bounded at any resolution.
    """
    N, c_in, P = x.shape
    c_in2, c_out = w_kn.shape
    assert c_in == c_in2
    if P % LANES == 0:
        R, L = P // LANES, LANES
    else:
        # TODO(synk): lane-sparse fallback for tiny spatial extents (demo-only).
        R, L = 1, P
    xv = x.reshape(N, c_in, R, L)
    tr = R if R <= _PROJ_MAX_ROWS else _PROJ_MAX_ROWS
    grid = (N, pl.cdiv(R, tr))

    out = pl.pallas_call(
        functools.partial(
            _channel_proj_kernel, c_in=c_in, c_out=c_out,
            scale=float(scale), shift=float(shift),
            lo=None if lo is None else float(lo),
            hi=None if hi is None else float(hi)),
        out_shape=jax.ShapeDtypeStruct((N, c_out, R, L), out_dtype),
        grid=grid,
        in_specs=[
            pl.BlockSpec(memory_space=pltpu.MemorySpace.SMEM),   # tiny weights
            pl.BlockSpec((None, c_in, tr, L), lambda s, i: (s, 0, i, 0)),
        ],
        out_specs=pl.BlockSpec((None, c_out, tr, L), lambda s, i: (s, 0, i, 0)),
        compiler_params=pltpu.CompilerParams(
            dimension_semantics=("parallel", "parallel"),
            vmem_limit_bytes=_VMEM_LIMIT,
        ),
    )(w_kn.astype(jnp.float32), xv)
    return out.reshape(N, c_out, P)


# --------------------------------------------------------------------------
# Deterministic stubs for external sub-modules (not translatable to Pallas)
# --------------------------------------------------------------------------
def _make_params():
    k = jax.random.PRNGKey(42)
    k1, k2 = jax.random.split(k)
    w_enc = (0.1 * jax.random.normal(k1, (3, 4))).astype(jnp.bfloat16)  # 3 -> 4
    w_dec = (0.1 * jax.random.normal(k2, (4, 3))).astype(jnp.bfloat16)  # 4 -> 3
    return {"w_enc": w_enc, "w_dec": w_dec}


def _sv3d_diffuse_and_denoise_stub(images, cam_poses, params):
    # TODO(synk): SV3D diffusion UNet + scheduler has no Pallas equivalent;
    # deterministic stub = 2x avg-pool (f32 accumulation) + per-pixel 1x1
    # channel projection (3 -> 4) with the Pallas VPU projection kernel.
    B, V, C, H, W = images.shape
    h, w = H // 2, W // 2
    pooled = images.astype(jnp.float32).reshape(B, V, C, h, 2, w, 2).mean(axis=(4, 6))
    x = pooled.reshape(B * V, C, h * w)                      # pure reshape, no transpose
    lat = pallas_channel_proj(x, params["w_enc"].astype(jnp.float32))
    lat = lat.reshape(B, V, 4, h, w)                         # [B,V,4,h,w] bf16
    return lat, None


def _vae_decode_stub(latents_bv, params, H, W):
    # TODO(synk): SD-VAE decoder has no Pallas equivalent; stub = per-pixel 1x1
    # channel projection (4 -> 3) with 1/scaling_factor folded into the weights
    # and the (*0.5+0.5).clamp(0,1) de-normalization fused as the kernel
    # epilogue (applied at (h,w), before NN upsampling — commutes with it).
    BV, C, h, w = latents_bv.shape
    x = latents_bv.reshape(BV, C, h * w)                     # pure reshape, no transpose
    w_dec = params["w_dec"].astype(jnp.float32) / SCALING_FACTOR
    rgb = pallas_channel_proj(x, w_dec, scale=0.5, shift=0.5, lo=0.0, hi=1.0)
    rgb = rgb.reshape(BV, 3, h, w)
    ry, rx = H // h, W // w
    if ry > 1 or rx > 1:
        # Single broadcast_to + reshape NN upsample (one HBM materialization,
        # not two chained jnp.repeat passes).
        rgb = jnp.broadcast_to(
            rgb[:, :, :, None, :, None], (BV, 3, h, ry, w, rx)
        ).reshape(BV, 3, H, W)
    return rgb


def _humanrec_reconstruct_stub(latents, cam_pos, n_views, H, W):
    # TODO(synk): HumanRec gaussian reconstruction + rasterizer has no Pallas
    # equivalent; deterministic stub render.
    B = latents.shape[0]
    feat = jnp.mean(latents.astype(jnp.float32), axis=(1, 2, 3, 4))     # [B]
    cam_feat = jnp.mean(cam_pos.astype(jnp.float32), axis=-1)           # [B, n_views]
    yy = jnp.linspace(0.0, 1.0, H)[:, None]
    xx = jnp.linspace(0.0, 1.0, W)[None, :]
    pattern = (yy * xx)[None, None, None]                               # [1,1,1,H,W]
    base = jax.nn.sigmoid(
        feat[:, None, None, None, None] + cam_feat[:, :, None, None, None]
    )                                                                   # [B,V,1,1,1]
    img = jnp.clip(base * pattern + 0.25, 0.0, 1.0)                     # [B,V,1,H,W]
    images = jnp.broadcast_to(img, (B, n_views, 3, H, W)).astype(jnp.bfloat16)
    alphas = img.astype(jnp.bfloat16)                                   # [B,V,1,H,W]
    return {"image": images, "alpha": alphas}, None


def _lpips_stub(gt_images, pred_images):
    # TODO(synk): LPIPS (VGG feature net) + bilinear 256x256 resize are not
    # translatable to Pallas here; stub returns 0.
    return jnp.float32(0.0)


# --------------------------------------------------------------------------
# compute_loss (NoiseLGM.forward default path)
# --------------------------------------------------------------------------
def compute_loss(data, params, lambda_lpips=0.0, weight_dtype=jnp.bfloat16):
    images = data["images_output"].astype(weight_dtype)        # [B,V,3,H,W]
    cam_poses = data["cam_poses_output"].astype(weight_dtype)
    B, V, C, H, W = images.shape

    pred_original_latents, _ = _sv3d_diffuse_and_denoise_stub(images, cam_poses, params)

    cam_poses_4x4 = data["cam_poses_4x4_output"].astype(weight_dtype)

    # torch.randint(1, V, (7,)) with a leading 0 — deterministic here.
    ridx_key = jax.random.PRNGKey(7)
    random_idxs = jax.random.randint(ridx_key, (7,), 1, V)
    random_idxs = jnp.concatenate(
        [jnp.zeros((1,), random_idxs.dtype), random_idxs]
    )                                                            # [8]
    n_sel = random_idxs.shape[0]

    latents = jnp.take(pred_original_latents, random_idxs[:4], axis=1)
    cam_poses_4x4 = jnp.take(cam_poses_4x4, random_idxs[:4], axis=1)
    cam_pos_sel = jnp.take(data["cam_pos"], random_idxs, axis=1)

    render_outputs, _ = _humanrec_reconstruct_stub(
        latents, cam_pos_sel, n_views=n_sel, H=H, W=W
    )
    pred_images = render_outputs["image"]                        # [B,8,3,H,W]
    pred_alphas = render_outputs["alpha"]                        # [B,8,1,H,W]

    gt_images = jnp.take(data["images_output"], random_idxs, axis=1)
    gt_masks = jnp.take(data["masks_output"], random_idxs, axis=1)

    # Denoised preview images: vae.decode(latents / scaling_factor) -> *0.5+0.5
    # clamp.  Rescale + de-normalization are fused into the Pallas decode kernel.
    lat_sub = jnp.take(pred_original_latents, random_idxs, axis=1)       # [B,8,4,h,w]
    lat_sub = lat_sub.reshape((-1,) + lat_sub.shape[2:])                 # [(B*8),4,h,w]
    dec = _vae_decode_stub(lat_sub, params, H, W)                        # [(B*8),3,H,W]
    denoised_images = dec.reshape(B, n_sel, 3, H, W)

    outputs = {}
    outputs["images_pred"] = pred_images
    outputs["images_denoised"] = denoised_images
    outputs["images_gt"] = gt_images

    image_mse = pallas_mse(pred_images, gt_images)               # Pallas reduction
    mask_mse = pallas_mse(pred_alphas, gt_masks)                 # Pallas reduction
    outputs["image_mse"] = image_mse
    outputs["mask_mse"] = mask_mse
    loss = image_mse + mask_mse

    lpips = _lpips_stub(gt_images, pred_images)
    outputs["lpips"] = lpips
    if lambda_lpips > 0.0:
        loss = loss + lambda_lpips * lpips

    outputs["loss"] = loss
    # psnr = -10 * log10(mean((pred - gt)^2)); reuses the Pallas MSE value.
    # (Reference has no eps guard; kept identical.)
    outputs["psnr"] = -10.0 * jnp.log10(image_mse)
    return outputs


# --------------------------------------------------------------------------
# Demo
# --------------------------------------------------------------------------
if __name__ == "__main__":
    B, V, C, H, W = 2, 8, 3, 16, 16
    key = jax.random.PRNGKey(0)
    ks = jax.random.split(key, 8)

    data = {
        "images_output": jax.random.uniform(ks[0], (B, V, C, H, W), jnp.float32),
        "masks_output": (jax.random.uniform(ks[1], (B, V, 1, H, W)) > 0.5).astype(jnp.float32),
        "cam_poses_output": jax.random.normal(ks[2], (B, V, 25), jnp.float32),
        "cam_poses_4x4_output": jax.random.normal(ks[3], (B, V, 4, 4), jnp.float32),
        "cam_view": jax.random.normal(ks[4], (B, V, 4, 4), jnp.float32),
        "cam_view_proj": jax.random.normal(ks[5], (B, V, 4, 4), jnp.float32),
        "cam_pos": jax.random.normal(ks[6], (B, V, 3), jnp.float32),
    }

    params = _make_params()
    outputs = compute_loss(data, params)
    jax.block_until_ready(outputs["loss"])

    # sanity: finite scalars, shapes as expected
    assert jnp.isfinite(outputs["loss"]).item()
    assert jnp.isfinite(outputs["psnr"]).item()
    assert outputs["images_denoised"].shape == (B, 8, 3, H, W)
    print("KERNEL_OK")
</pallas_src>

<mosaic_0001>
module attributes {stable_mosaic.version = 11 : i64} {
  func.func @_channel_proj_kernel(%arg0: i32, %arg1: i32, %arg2: memref<3x4xf32, #tpu.memory_space<smem>>, %arg3: memref<1x3x1x64xf32, #tpu.memory_space<vmem>>, %arg4: memref<1x4x1x64xbf16, #tpu.memory_space<vmem>>) attributes {dimension_semantics = [#tpu.dimension_semantics<parallel>, #tpu.dimension_semantics<parallel>], iteration_bounds = array<i64: 16, 1>, scalar_prefetch = 0 : i64, scratch_operands = 0 : i64, tpu.core_type = #tpu.core_type<tc>, window_params = [{transform_indices = @transform_0, window_bounds = array<i64: 3, 4>}, {transform_indices = @transform_1, window_bounds = array<i64: 1, 3, 1, 64>}, {transform_indices = @transform_2, window_bounds = array<i64: 1, 4, 1, 64>}]} {
    %c0 = arith.constant 0 : index
    %c0_0 = arith.constant 0 : index
    %c0_1 = arith.constant 0 : index
    %c0_2 = arith.constant 0 : index
    %0 = vector.load %arg3[%c0, %c0_0, %c0_1, %c0_2] : memref<1x3x1x64xf32, #tpu.memory_space<vmem>>, vector<1x1x1x64xf32>
    %1 = vector.shape_cast %0 : vector<1x1x1x64xf32> to vector<1x64xf32>
    %c0_3 = arith.constant 0 : index
    %c1 = arith.constant 1 : index
    %c0_4 = arith.constant 0 : index
    %c0_5 = arith.constant 0 : index
    %2 = vector.load %arg3[%c0_3, %c1, %c0_4, %c0_5] : memref<1x3x1x64xf32, #tpu.memory_space<vmem>>, vector<1x1x1x64xf32>
    %3 = vector.shape_cast %2 : vector<1x1x1x64xf32> to vector<1x64xf32>
    %c0_6 = arith.constant 0 : index
    %c2 = arith.constant 2 : index
    %c0_7 = arith.constant 0 : index
    %c0_8 = arith.constant 0 : index
    %4 = vector.load %arg3[%c0_6, %c2, %c0_7, %c0_8] : memref<1x3x1x64xf32, #tpu.memory_space<vmem>>, vector<1x1x1x64xf32>
    %5 = vector.shape_cast %4 : vector<1x1x1x64xf32> to vector<1x64xf32>
    %c0_9 = arith.constant 0 : index
    %c0_10 = arith.constant 0 : index
    %6 = memref.load %arg2[%c0_9, %c0_10] : memref<3x4xf32, #tpu.memory_space<smem>>
    %7 = vector.broadcast %6 : f32 to vector<1x64xf32>
    %8 = arith.mulf %1, %7 : vector<1x64xf32>
    %c1_11 = arith.constant 1 : index
    %c0_12 = arith.constant 0 : index
    %9 = memref.load %arg2[%c1_11, %c0_12] : memref<3x4xf32, #tpu.memory_space<smem>>
    %10 = vector.broadcast %9 : f32 to vector<1x64xf32>
    %11 = arith.mulf %3, %10 : vector<1x64xf32>
    %12 = arith.addf %8, %11 : vector<1x64xf32>
    %c2_13 = arith.constant 2 : index
    %c0_14 = arith.constant 0 : index
    %13 = memref.load %arg2[%c2_13, %c0_14] : memref<3x4xf32, #tpu.memory_space<smem>>
    %14 = vector.broadcast %13 : f32 to vector<1x64xf32>
    %15 = arith.mulf %5, %14 : vector<1x64xf32>
    %16 = arith.addf %12, %15 : vector<1x64xf32>
    %cst = arith.constant 1.000000e+00 : f32
    %17 = vector.broadcast %cst : f32 to vector<1x64xf32>
    %18 = arith.mulf %16, %17 : vector<1x64xf32>
    %cst_15 = arith.constant 0.000000e+00 : f32
    %19 = vector.broadcast %cst_15 : f32 to vector<1x64xf32>
    %20 = arith.addf %18, %19 : vector<1x64xf32>
    %21 = arith.truncf %20 : vector<1x64xf32> to vector<1x64xbf16>
    %c0_16 = arith.constant 0 : index
    %c0_17 = arith.constant 0 : index
    %c0_18 = arith.constant 0 : index
    %c0_19 = arith.constant 0 : index
    %22 = vector.load %arg4[%c0_16, %c0_17, %c0_18, %c0_19] : memref<1x4x1x64xbf16, #tpu.memory_space<vmem>>, vector<1x1x1x64xbf16>
    %23 = vector.shape_cast %22 : vector<1x1x1x64xbf16> to vector<1x64xbf16>
    %24 = vector.shape_cast %21 : vector<1x64xbf16> to vector<1x1x1x64xbf16>
    tpu.vector_store %arg4[%c0_16, %c0_17, %c0_18, %c0_19], %24 {strides = array<i32>} : memref<1x4x1x64xbf16, #tpu.memory_space<vmem>>, vector<1x1x1x64xbf16>,
    %c0_20 = arith.constant 0 : index
    %c1_21 = arith.constant 1 : index
    %25 = memref.load %arg2[%c0_20, %c1_21] : memref<3x4xf32, #tpu.memory_space<smem>>
    %26 = vector.broadcast %25 : f32 to vector<1x64xf32>
    %27 = arith.mulf %1, %26 : vector<1x64xf32>
    %c1_22 = arith.constant 1 : index
    %c1_23 = arith.constant 1 : index
    %28 = memref.load %arg2[%c1_22, %c1_23] : memref<3x4xf32, #tpu.memory_space<smem>>
    %29 = vector.broadcast %28 : f32 to vector<1x64xf32>
    %30 = arith.mulf %3, %29 : vector<1x64xf32>
    %31 = arith.addf %27, %30 : vector<1x64xf32>
    %c2_24 = arith.constant 2 : index
    %c1_25 = arith.constant 1 : index
    %32 = memref.load %arg2[%c2_24, %c1_25] : memref<3x4xf32, #tpu.memory_space<smem>>
    %33 = vector.broadcast %32 : f32 to vector<1x64xf32>
    %34 = arith.mulf %5, %33 : vector<1x64xf32>
    %35 = arith.addf %31, %34 : vector<1x64xf32>
    %cst_26 = arith.constant 1.000000e+00 : f32
    %36 = vector.broadcast %cst_26 : f32 to vector<1x64xf32>
    %37 = arith.mulf %35, %36 : vector<1x64xf32>
    %cst_27 = arith.constant 0.000000e+00 : f32
    %38 = vector.broadcast %cst_27 : f32 to vector<1x64xf32>
    %39 = arith.addf %37, %38 : vector<1x64xf32>
    %40 = arith.truncf %39 : vector<1x64xf32> to vector<1x64xbf16>
    %c0_28 = arith.constant 0 : index
    %c1_29 = arith.constant 1 : index
    %c0_30 = arith.constant 0 : index
    %c0_31 = arith.constant 0 : index
    %41 = vector.load %arg4[%c0_28, %c1_29, %c0_30, %c0_31] : memref<1x4x1x64xbf16, #tpu.memory_space<vmem>>, vector<1x1x1x64xbf16>
    %42 = vector.shape_cast %41 : vector<1x1x1x64xbf16> to vector<1x64xbf16>
    %43 = vector.shape_cast %40 : vector<1x64xbf16> to vector<1x1x1x64xbf16>
    tpu.vector_store %arg4[%c0_28, %c1_29, %c0_30, %c0_31], %43 {strides = array<i32>} : memref<1x4x1x64xbf16, #tpu.memory_space<vmem>>, vector<1x1x1x64xbf16>,
    %c0_32 = arith.constant 0 : index
    %c2_33 = arith.constant 2 : index
    %44 = memref.load %arg2[%c0_32, %c2_33] : memref<3x4xf32, #tpu.memory_space<smem>>
    %45 = vector.broadcast %44 : f32 to vector<1x64xf32>
    %46 = arith.mulf %1, %45 : vector<1x64xf32>
    %c1_34 = arith.constant 1 : index
    %c2_35 = arith.constant 2 : index
    %47 = memref.load %arg2[%c1_34, %c2_35] : memref<3x4xf32, #tpu.memory_space<smem>>
    %48 = vector.broadcast %47 : f32 to vector<1x64xf32>
    %49 = arith.mulf %3, %48 : vector<1x64xf32>
    %50 = arith.addf %46, %49 : vector<1x64xf32>
    %c2_36 = arith.constant 2 : index
    %c2_37 = arith.constant 2 : index
    %51 = memref.load %arg2[%c2_36, %c2_37] : memref<3x4xf32, #tpu.memory_space<smem>>
    %52 = vector.broadcast %51 : f32 to vector<1x64xf32>
    %53 = arith.mulf %5, %52 : vector<1x64xf32>
    %54 = arith.addf %50, %53 : vector<1x64xf32>
    %cst_38 = arith.constant 1.000000e+00 : f32
    %55 = vector.broadcast %cst_38 : f32 to vector<1x64xf32>
    %56 = arith.mulf %54, %55 : vector<1x64xf32>
    %cst_39 = arith.constant 0.000000e+00 : f32
    %57 = vector.broadcast %cst_39 : f32 to vector<1x64xf32>
    %58 = arith.addf %56, %57 : vector<1x64xf32>
    %59 = arith.truncf %58 : vector<1x64xf32> to vector<1x64xbf16>
    %c0_40 = arith.constant 0 : index
    %c2_41 = arith.constant 2 : index
    %c0_42 = arith.constant 0 : index
    %c0_43 = arith.constant 0 : index
    %60 = vector.load %arg4[%c0_40, %c2_41, %c0_42, %c0_43] : memref<1x4x1x64xbf16, #tpu.memory_space<vmem>>, vector<1x1x1x64xbf16>
    %61 = vector.shape_cast %60 : vector<1x1x1x64xbf16> to vector<1x64xbf16>
    %62 = vector.shape_cast %59 : vector<1x64xbf16> to vector<1x1x1x64xbf16>
    tpu.vector_store %arg4[%c0_40, %c2_41, %c0_42, %c0_43], %62 {strides = array<i32>} : memref<1x4x1x64xbf16, #tpu.memory_space<vmem>>, vector<1x1x1x64xbf16>,
    %c0_44 = arith.constant 0 : index
    %c3 = arith.constant 3 : index
    %63 = memref.load %arg2[%c0_44, %c3] : memref<3x4xf32, #tpu.memory_space<smem>>
    %64 = vector.broadcast %63 : f32 to vector<1x64xf32>
    %65 = arith.mulf %1, %64 : vector<1x64xf32>
    %c1_45 = arith.constant 1 : index
    %c3_46 = arith.constant 3 : index
    %66 = memref.load %arg2[%c1_45, %c3_46] : memref<3x4xf32, #tpu.memory_space<smem>>
    %67 = vector.broadcast %66 : f32 to vector<1x64xf32>
    %68 = arith.mulf %3, %67 : vector<1x64xf32>
    %69 = arith.addf %65, %68 : vector<1x64xf32>
    %c2_47 = arith.constant 2 : index
    %c3_48 = arith.constant 3 : index
    %70 = memref.load %arg2[%c2_47, %c3_48] : memref<3x4xf32, #tpu.memory_space<smem>>
    %71 = vector.broadcast %70 : f32 to vector<1x64xf32>
    %72 = arith.mulf %5, %71 : vector<1x64xf32>
    %73 = arith.addf %69, %72 : vector<1x64xf32>
    %cst_49 = arith.constant 1.000000e+00 : f32
    %74 = vector.broadcast %cst_49 : f32 to vector<1x64xf32>
    %75 = arith.mulf %73, %74 : vector<1x64xf32>
    %cst_50 = arith.constant 0.000000e+00 : f32
    %76 = vector.broadcast %cst_50 : f32 to vector<1x64xf32>
    %77 = arith.addf %75, %76 : vector<1x64xf32>
    %78 = arith.truncf %77 : vector<1x64xf32> to vector<1x64xbf16>
    %c0_51 = arith.constant 0 : index
    %c3_52 = arith.constant 3 : index
    %c0_53 = arith.constant 0 : index
    %c0_54 = arith.constant 0 : index
    %79 = vector.load %arg4[%c0_51, %c3_52, %c0_53, %c0_54] : memref<1x4x1x64xbf16, #tpu.memory_space<vmem>>, vector<1x1x1x64xbf16>
    %80 = vector.shape_cast %79 : vector<1x1x1x64xbf16> to vector<1x64xbf16>
    %81 = vector.shape_cast %78 : vector<1x64xbf16> to vector<1x1x1x64xbf16>
    tpu.vector_store %arg4[%c0_51, %c3_52, %c0_53, %c0_54], %81 {strides = array<i32>} : memref<1x4x1x64xbf16, #tpu.memory_space<vmem>>, vector<1x1x1x64xbf16>,
    return
  }
  func.func @transform_0(%arg0: i32, %arg1: i32) -> (i32, i32) {
    %c0_i32 = arith.constant 0 : i32
    %c0_i32_0 = arith.constant 0 : i32
    %c0_i32_1 = arith.constant 0 : i32
    return %c0_i32, %c0_i32_0 : i32, i32
  }
  func.func @transform_1(%arg0: i32, %arg1: i32) -> (i32, i32, i32, i32) {
    %c0_i32 = arith.constant 0 : i32
    %c0_i32_0 = arith.constant 0 : i32
    %c0_i32_1 = arith.constant 0 : i32
    return %arg0, %c0_i32, %arg1, %c0_i32_0 : i32, i32, i32, i32
  }
  func.func @transform_2(%arg0: i32, %arg1: i32) -> (i32, i32, i32, i32) {
    %c0_i32 = arith.constant 0 : i32
    %c0_i32_0 = arith.constant 0 : i32
    %c0_i32_1 = arith.constant 0 : i32
    return %arg0, %c0_i32, %arg1, %c0_i32_0 : i32, i32, i32, i32
  }
}

</mosaic_0001>

<llo_original>
// kernel: tpu_custom_call.1
$region0: #{tpu_custom_call.1}
  #allocation0 [shape = 'u32[]', space=smem, size = 0x4, offset = 0x4, fixed_abs, tag = 'smem constant byte address 0x4 - core index']
  #allocation1 [shape = 'u32[72,128]{1,0:T(1,128)}', space=vmem, size = 0x9000, scoped, tag = 'internal scratch']
  %s0 = inlined_call_operand.hbm [shape: f32[3,4], index: 0, kind: input, shape index: {}]
  %s1 = inlined_call_operand.hbm [shape: f32[16,3,1,64], index: 1, kind: input, shape index: {}]
  %s2 = inlined_call_operand.vmem [shape: bf16[16,4,1,64], index: 2, kind: output, shape index: {}]
  %s3 = sld [smem:[#allocation0]]
  $region49: #{tpu_custom_call.1} parent=0
    _
  %s5 = ssub.s32 1, %s3
  %s6 = scalar_select 0, %s5, %s3
  $region1: #{tpu_custom_call.1} parent=0
    #allocation2 [shape = 'u8[2048]{0}', space=smem, size = 0x800, scoped, tag = 'input window, operand 0, single buffered']
    #allocation3 [shape = 's32[2]{0}', space=sflag, size = 0x8, scoped, tag = 'scoped memory for tpu_custom_call.1']
    #allocation4 [shape = 's32[2]{0}', space=sflag, size = 0x8, scoped, tag = 'scoped memory for tpu_custom_call.1']
    #allocation5 [shape = 'u8[3072]{0}', space=vmem, size = 0xc00, scoped, tag = 'input window, operand 1']
    %7 = vsyncpa [#allocation4], 0
    %8 = vsyncpa [#allocation3], 0
    %s9 = scalar_lea.sflag [#allocation3], 1
    %10 = vsyncpa %s9, 0
    loop: start=0, step=1, limit=18
    $region2: #{tpu_custom_call.1} parent=1 // loop_pre_header
      _
    $region3: #{tpu_custom_call.1} parent=1 // loop_header
      %s12 = sphi 0, %s16
      %p13 = scmp.ge.s32.totalorder %s12, 18
      %s19 = sphi 0, %s31
      %s20 = sphi 0, %s27
      %s21 = sphi 0, %s19
      %s22 = sphi 0, %s20
      %s23 = sphi 0, %s21
      %s24 = sphi 0, %s22
      %s32 = sphi 0, %s32
      %s34 = sphi 0, %s32
      %s35 = sphi 0, %s34
      %s49 = sphi 0, %s35
      %s57 = sphi 0, %s59
      %s60 = sphi 0, %s57
      %s61 = sphi 0, %s60
      %s77 = sphi 0, %s61
      %s85 = sphi 0, %s87
      %s88 = sphi 0, %s85
      %s89 = sphi 0, %s88
      %s105 = sphi 0, %s89
    $region4: #{tpu_custom_call.1} parent=1 // loop_header_branch
      %15 = sbr.rel (%p13) target = $region8
    $region5: #{tpu_custom_call.1} parent=1 // loop_body
      %s17 = ssub.s32 %s12, 1
      %s18 = ssub.s32 %s12, 2
      %s25 = sadd.s32 1, %s20
      %p26 = scmp.ge.s32.totalorder %s25, 1
      %s27 = scalar_select %p26, 0, %s25
      %s28 = sadd.s32 1, %s19
      %s29 = scalar_select %p26, %s28, %s19
      %p30 = scmp.ge.s32.totalorder %s29, 16
      %s31 = scalar_select %p30, 0, %s29
      %s33 = sadd.s32 %s32, 1
      %p36 = scmp.eq.s32.totalorder %s12, 15
      %p37 = scmp.ne.s32.totalorder %s32, %s34
      %p38 = scmp.eq.s32.totalorder %s12, 0
      %p39 = por %p37, %p38
      %p40 = scmp.ne.s32.totalorder %s32, %s34
      %p41 = scmp.eq.s32.totalorder %s17, 15
      %p42 = por %p40, %p41
      %p43 = scmp.ne.s32.totalorder %s34, %s35
      %p44 = scmp.eq.s32.totalorder %s17, 0
      %p45 = por %p43, %p44
      %p46 = scmp.ne.s32.totalorder %s34, %s35
      %p47 = scmp.eq.s32.totalorder %s18, 15
      %p48 = por %p46, %p47
      %p50 = scmp.ne.s32.totalorder %s35, %s49
      %p51 = scmp.eq.s32.totalorder %s18, 0
      %p52 = por %p50, %p51
      %s53 = ssub.s32 %s19, %s31
      %s54 = ssub.s32 %s20, %s27
      %s55 = sor.u32 %s53, %s54
      %p56 = scmp.eq.s32.totalorder %s55, 0
      %s58 = sadd.s32 %s57, 1
      %s59 = scalar_select %p56, %s57, %s58
      %p62 = pneg %p56
      %p63 = scmp.eq.s32.totalorder %s12, 15
      %p64 = por %p62, %p63
      %p65 = scmp.ne.s32.totalorder %s57, %s60
      %p66 = scmp.eq.s32.totalorder %s12, 0
      %p67 = por %p65, %p66
      %p68 = scmp.ne.s32.totalorder %s57, %s60
      %p69 = scmp.eq.s32.totalorder %s17, 15
      %p70 = por %p68, %p69
      %p71 = scmp.ne.s32.totalorder %s60, %s61
      %p72 = scmp.eq.s32.totalorder %s17, 0
      %p73 = por %p71, %p72
      %p74 = scmp.ne.s32.totalorder %s60, %s61
      %p75 = scmp.eq.s32.totalorder %s18, 15
      %p76 = por %p74, %p75
      %p78 = scmp.ne.s32.totalorder %s61, %s77
      %p79 = scmp.eq.s32.totalorder %s18, 0
      %p80 = por %p78, %p79
      %s81 = ssub.s32 %s19, %s31
      %s82 = ssub.s32 %s20, %s27
      %s83 = sor.u32 %s81, %s82
      %p84 = scmp.eq.s32.totalorder %s83, 0
      %s86 = sadd.s32 %s85, 1
      %s87 = scalar_select %p84, %s85, %s86
      %p90 = pneg %p84
      %p91 = scmp.eq.s32.totalorder %s12, 15
      %p92 = por %p90, %p91
      %p93 = scmp.ne.s32.totalorder %s85, %s88
      %p94 = scmp.eq.s32.totalorder %s12, 0
      %p95 = por %p93, %p94
      %p96 = scmp.ne.s32.totalorder %s85, %s88
      %p97 = scmp.eq.s32.totalorder %s17, 15
      %p98 = por %p96, %p97
      %p99 = scmp.ne.s32.totalorder %s88, %s89
      %p100 = scmp.eq.s32.totalorder %s17, 0
      %p101 = por %p99, %p100
      %p102 = scmp.ne.s32.totalorder %s88, %s89
      %p103 = scmp.eq.s32.totalorder %s18, 15
      %p104 = por %p102, %p103
      %p106 = scmp.ne.s32.totalorder %s89, %s105
      %p107 = scmp.eq.s32.totalorder %s18, 0
      %p108 = por %p106, %p107
      %p109 = scmp.le.s32.totalorder 1, %s12
      %p110 = scmp.lt.s32.totalorder %s12, 17
      %p111 = pnand %p109, %p110
      %p112 = pneg %p111
      // Predicated region
      $region9: #{tpu_custom_call.1} parent=5 // pred_check
        _
      $region10: #{tpu_custom_call.1} parent=5 // pred_check_branch
        %114 = sbr.rel (%p111) target = $region12
      $region11: #{tpu_custom_call.1} parent=5 // pred_region
        %s115 = ssub.s32 %s12, 1
        // Predicated region
        $region13: #{tpu_custom_call.1} parent=11 // pred_check
          %p116 = pneg %p45
        $region14: #{tpu_custom_call.1} parent=11 // pred_check_branch
          %118 = sbr.rel (%p116) target = $region16
        $region15: #{tpu_custom_call.1} parent=11 // pred_region
          %120 = vsyncadd [#allocation4], 0
          %s122 = sshll.u32 %s0, 4
          %s123 = int_to_ptr.hbm [resolvable:$true] %s122
          %125 = dma.hbm_to_smem %s123, 64, [#allocation2], [#allocation4]
        $region16: #{tpu_custom_call.1} parent=11 // pred_fallthru
          _
      $region12: #{tpu_custom_call.1} parent=5 // pred_fallthru
        _
      %p126 = scmp.lt.s32.totalorder %s12, 16
      // Predicated region
      $region17: #{tpu_custom_call.1} parent=5 // pred_check
        %p127 = pneg %p126
      $region18: #{tpu_custom_call.1} parent=5 // pred_check_branch
        %129 = sbr.rel (%p127) target = $region20
      $region19: #{tpu_custom_call.1} parent=5 // pred_region
        // Predicated region
        $region21: #{tpu_custom_call.1} parent=19 // pred_check
          %p130 = pneg %p67
        $region22: #{tpu_custom_call.1} parent=19 // pred_check_branch
          %132 = sbr.rel (%p130) target = $region24
        $region23: #{tpu_custom_call.1} parent=19 // pred_region
          %s133 = sand.u32 %s57, 1
          %s134 = scalar_lea.sflag [#allocation3], %s133
          %s135 = sand.u32 %s57, 1
          %s136 = smul.addr %s135, 3
          %s137 = scalar_lea.vmem [#allocation5], %s136
          %139 = vsyncadd %s134, 0
          %s140 = smul.addr %s19, 3
          %s141 = sadd.s32 %s20, %s140
          %s142 = scalar_lea.hbm %s1, %s141
          %s143 = sshll.u32 %s142, 4
          %s144 = int_to_ptr.hbm [resolvable:$true] %s143
          %s145 = sshll.u32 %s137, 4
          %s146 = int_to_ptr.vmem [resolvable:$true] %s145
          %151 = dma.hbm_to_vmem [thread:$0]  %s144, 48, %s146, %s134, 16, 16, 1
        $region24: #{tpu_custom_call.1} parent=19 // pred_fallthru
          _
      $region20: #{tpu_custom_call.1} parent=5 // pred_fallthru
        _
      %p152 = scmp.le.s32.totalorder 1, %s12
      %p153 = scmp.lt.s32.totalorder %s12, 17
      %p154 = pnand %p152, %p153
      %p155 = pneg %p154
      // Predicated region
      $region25: #{tpu_custom_call.1} parent=5 // pred_check
        _
      $region26: #{tpu_custom_call.1} parent=5 // pred_check_branch
        %157 = sbr.rel (%p154) target = $region28
      $region27: #{tpu_custom_call.1} parent=5 // pred_region
        %s158 = ssub.s32 %s12, 1
        // Predicated region
        $region29: #{tpu_custom_call.1} parent=27 // pred_check
          %p159 = pneg %p45
        $region30: #{tpu_custom_call.1} parent=27 // pred_check_branch
          %161 = sbr.rel (%p159) target = $region32
        $region31: #{tpu_custom_call.1} parent=27 // pred_region
          %163 = dma.done [#allocation4], 64
        $region32: #{tpu_custom_call.1} parent=27 // pred_fallthru
          _
        %s164 = sand.u32 %s60, 1
        %s165 = scalar_lea.sflag [#allocation3], %s164
        %s166 = sand.u32 %s60, 1
        %s167 = smul.addr %s166, 3
        %s168 = scalar_lea.vmem [#allocation5], %s167
        // Predicated region
        $region33: #{tpu_custom_call.1} parent=27 // pred_check
          %p169 = pneg %p73
        $region34: #{tpu_custom_call.1} parent=27 // pred_check_branch
          %171 = sbr.rel (%p169) target = $region36
        $region35: #{tpu_custom_call.1} parent=27 // pred_region
          %173 = dma.done %s165, 48
        $region36: #{tpu_custom_call.1} parent=27 // pred_fallthru
          _
        %174 = sfence
        %p175 = pneg %p45
        %p176 = pneg %p42
        %s177 = sand.u32 %s60, 1
        %s178 = scalar_lea.sflag [#allocation3], %s177
        %s179 = sand.u32 %s60, 1
        %s180 = smul.addr %s179, 3
        %s181 = scalar_lea.vmem [#allocation5], %s180
        %p182 = pneg %p73
        %p183 = pneg %p70
        %p184 = pneg %p101
        %p185 = pneg %p98
        %p186 = scmp.lt.s32.totalorder %s21, 15
        %s187 = scalar_select %p186, %s21, 15
        %p188 = scmp.lt.s32.totalorder %s22, 0
        %s189 = scalar_select %p188, %s22, 0
        %s190 = smul.addr %s187, 4
        %s191 = sadd.s32 %s189, %s190
        %s192 = scalar_lea.vmem %s2, %s191
        %p193 = scmp.lt.s32.totalorder %s21, 15
        %s194 = scalar_select %p193, %s21, 15
        %p195 = scmp.lt.s32.totalorder %s22, 0
        %s196 = scalar_select %p195, %s22, 0
        %s197 = smul.addr %s194, 4
        %s198 = sadd.s32 %s196, %s197
        %s199 = scalar_lea.vmem %s2, %s198
        %v200 = vld [vmem:[%s168] sm:$0x1]
        %s201 = scalar_lea.vmem %s168, 1 [#allocation5]
        %v202 = vld [vmem:[%s201] sm:$0x1]
        %s203 = scalar_lea.vmem %s168, 2 [#allocation5]
        %v204 = vld [vmem:[%s203] sm:$0x1]
        %s205 = sld [smem:[#allocation2]]
        %v206 = vstv %s205
        %v207 = vmul.f32 %v200, %v206
        %s208 = sld [smem:[#allocation2 + $0x80]]
        %v209 = vstv %s208
        %v210 = vmul.f32 %v202, %v209
        %v211 = vadd.f32 %v207, %v210
        %s212 = sld [smem:[#allocation2 + $0x100]]
        %v213 = vstv %s212
        %v214 = vmul.f32 %v204, %v213
        %v215 = vadd.f32 %v211, %v214
        %v216 = vadd.f32 %v215, 0.0
        %v217 = vpack.c.bf16 %v216, %v216
        %vm218 = vcmask 516096
        %vm219 = vsmask.f32 256
        %vm220 = vmand %vm218, %vm219
        %v221 = vld [vmem:[%s199] sm:$0x1]
        %v222 = vsel %vm220, %v217, %v221
        %223 = vst [vmem:[%s199] sm:$0x1] %v222
        %s224 = sld [smem:[#allocation2 + $0x1]]
        %v225 = vstv %s224
        %v226 = vmul.f32 %v200, %v225
        %s227 = sld [smem:[#allocation2 + $0x81]]
        %v228 = vstv %s227
        %v229 = vmul.f32 %v202, %v228
        %v230 = vadd.f32 %v226, %v229
        %s231 = sld [smem:[#allocation2 + $0x101]]
        %v232 = vstv %s231
        %v233 = vmul.f32 %v204, %v232
        %v234 = vadd.f32 %v230, %v233
        %v235 = vadd.f32 %v234, 0.0
        %v236 = vpack.c.bf16 %v235, %v235
        %s237 = scalar_lea.vmem %s199, 1
        %v238 = vld [vmem:[%s237] sm:$0x1]
        %v239 = vsel %vm220, %v236, %v238
        %240 = vst [vmem:[%s237] sm:$0x1] %v239
        %s241 = sld [smem:[#allocation2 + $0x2]]
        %v242 = vstv %s241
        %v243 = vmul.f32 %v200, %v242
        %s244 = sld [smem:[#allocation2 + $0x82]]
        %v245 = vstv %s244
        %v246 = vmul.f32 %v202, %v245
        %v247 = vadd.f32 %v243, %v246
        %s248 = sld [smem:[#allocation2 + $0x102]]
        %v249 = vstv %s248
        %v250 = vmul.f32 %v204, %v249
        %v251 = vadd.f32 %v247, %v250
        %v252 = vadd.f32 %v251, 0.0
        %v253 = vpack.c.bf16 %v252, %v252
        %s254 = scalar_lea.vmem %s199, 2
        %v255 = vld [vmem:[%s254] sm:$0x1]
        %v256 = vsel %vm220, %v253, %v255
        %257 = vst [vmem:[%s254] sm:$0x1] %v256
        %s258 = sld [smem:[#allocation2 + $0x3]]
        %v259 = vstv %s258
        %v260 = vmul.f32 %v200, %v259
        %s261 = sld [smem:[#allocation2 + $0x83]]
        %v262 = vstv %s261
        %v263 = vmul.f32 %v202, %v262
        %v264 = vadd.f32 %v260, %v263
        %s265 = sld [smem:[#allocation2 + $0x103]]
        %v266 = vstv %s265
        %v267 = vmul.f32 %v204, %v266
        %v268 = vadd.f32 %v264, %v267
        %v269 = vadd.f32 %v268, 0.0
        %v270 = vpack.c.bf16 %v269, %v269
        %s271 = scalar_lea.vmem %s199, 3
        %v272 = vld [vmem:[%s271] sm:$0x1]
        %v273 = vsel %vm220, %v270, %v272
        %274 = vst [vmem:[%s271] sm:$0x1] %v273
        %p275 = scmp.lt.s32.totalorder %s21, 15
        %s276 = scalar_select %p275, %s21, 15
        %p277 = scmp.lt.s32.totalorder %s22, 0
        %s278 = scalar_select %p277, %s22, 0
        %s279 = smul.addr %s276, 4
        %s280 = sadd.s32 %s278, %s279
        %s281 = scalar_lea.vmem %s2, %s280
        // Predicated region
        $region37: #{tpu_custom_call.1} parent=27 // pred_check
          %p282 = pneg %p98
        $region38: #{tpu_custom_call.1} parent=27 // pred_check_branch
          %284 = sbr.rel (%p282) target = $region40
        $region39: #{tpu_custom_call.1} parent=27 // pred_region
          _
        $region40: #{tpu_custom_call.1} parent=27 // pred_fallthru
          _
      $region28: #{tpu_custom_call.1} parent=5 // pred_fallthru
        _
      %p285 = scmp.le.s32.totalorder 2, %s12
      // Predicated region
      $region41: #{tpu_custom_call.1} parent=5 // pred_check
        %p286 = pneg %p285
      $region42: #{tpu_custom_call.1} parent=5 // pred_check_branch
        %288 = sbr.rel (%p286) target = $region44
      $region43: #{tpu_custom_call.1} parent=5 // pred_region
        %s289 = ssub.s32 %s12, 2
        // Predicated region
        $region45: #{tpu_custom_call.1} parent=43 // pred_check
          %p290 = pneg %p104
        $region46: #{tpu_custom_call.1} parent=43 // pred_check_branch
          %292 = sbr.rel (%p290) target = $region48
        $region47: #{tpu_custom_call.1} parent=43 // pred_region
          %p293 = scmp.lt.s32.totalorder %s23, 15
          %s294 = scalar_select %p293, %s23, 15
          %p295 = scmp.lt.s32.totalorder %s24, 0
          %s296 = scalar_select %p295, %s24, 0
          %s297 = smul.addr %s294, 4
          %s298 = sadd.s32 %s296, %s297
          %s299 = scalar_lea.vmem %s2, %s298
        $region48: #{tpu_custom_call.1} parent=43 // pred_fallthru
          _
      $region44: #{tpu_custom_call.1} parent=5 // pred_fallthru
        _
    $region6: #{tpu_custom_call.1} parent=1 // loop_footer
      %s16 = sadd.s32 1, %s12
    $region7: #{tpu_custom_call.1} parent=1 // loop_footer_branch
      %11 = sbr.rel target = $region3
    $region8: #{tpu_custom_call.1} parent=1 // loop_exit
      _
    %300 = vsyncpa [#allocation3], 1
    %s301 = scalar_lea.sflag [#allocation3], 1
    %302 = vsyncpa %s301, 1
    %303 = vsyncpa [#allocation4], 1
    %s304 = scalar_lea.sflag [#allocation4], 1
    %305 = vsyncpa %s304, 1

</llo_original>
